<compile_context>
chip_gen: v5e
topology: v5e:2x2
jax: 0.10.0
libtpu: 0.0.40
codegen_flags: <defaults>
</compile_context>

<pallas_src>
import functools

import jax
import jax.numpy as jnp
from jax.experimental import pallas as pl
from jax.experimental.pallas import tpu as pltpu

_SUBLANE = 8  # sublane granularity for the batch axis


def _round_up(x: int, m: int) -> int:
    return ((x + m - 1) // m) * m


def _has_two_tensorcores() -> bool:
    """True on chips that shard a 'parallel' grid axis across 2 TensorCores (v7x)."""
    try:
        kind = jax.devices()[0].device_kind.lower()
    except Exception:  # pragma: no cover - defensive
        return False
    return ("v7" in kind) or ("7x" in kind)


def _choose_batch_tiling(batch: int, block_m: int, two_cores: bool):
    """Pick (bm, grid_m): bm sublane-aligned, grid_m even when two_cores."""
    b_aligned = _round_up(max(batch, 1), _SUBLANE)
    bm = max(_SUBLANE, min(block_m, b_aligned))
    grid_m = pl.cdiv(b_aligned, bm)
    if two_cores and b_aligned >= 2 * _SUBLANE:
        # Rebalance so both TensorCores get (nearly) equal, even-count work.
        target = grid_m if grid_m % 2 == 0 else grid_m + 1
        bm = max(_SUBLANE, _round_up(pl.cdiv(b_aligned, target), _SUBLANE))
        grid_m = pl.cdiv(b_aligned, bm)
    return bm, grid_m


def _mlp_kernel(x_ref, w1_ref, b1_ref, w2_ref, b2_ref, o_ref):
    # Hidden layer: bf16 operands on the MXU, f32 accumulation.
    h = jnp.dot(x_ref[...], w1_ref[...], preferred_element_type=jnp.float32)
    h = h + b1_ref[...]                                    # (bm, H) + (1, H), f32
    h = jnp.where(h >= 0.0, h, jnp.float32(0.01) * h)      # LeakyReLU, f32 VPU
    # Dropout (eval mode) == identity.
    # Output layer: cast activation to bf16 only for the MXU operand.
    out = jnp.dot(h.astype(jnp.bfloat16), w2_ref[...],
                  preferred_element_type=jnp.float32)
    o_ref[...] = (out + b2_ref[...]).astype(o_ref.dtype)   # (bm, C), f32


@functools.partial(jax.jit, static_argnames=("block_m", "two_cores"))
def _forward(x, w1, b1, w2, b2, *, block_m: int, two_cores: bool):
    B, in_dim = x.shape
    hidden = w1.shape[1]
    n_classes = w2.shape[1]

    bm, grid_m = _choose_batch_tiling(B, block_m, two_cores)
    b_pad = grid_m * bm

    # Batch pad fused with the bf16 cast -> single wrapper pass over x.
    x_bf = jnp.pad(x, ((0, b_pad - B), (0, 0))).astype(jnp.bfloat16)
    w1_bf = w1.astype(jnp.bfloat16)
    w2_bf = w2.astype(jnp.bfloat16)
    b1_2d = b1.reshape(1, hidden)        # stays f32
    b2_2d = b2.reshape(1, n_classes)     # stays f32

    out_padded = pl.pallas_call(
        _mlp_kernel,
        out_shape=jax.ShapeDtypeStruct((b_pad, n_classes), jnp.float32),
        grid_spec=pl.GridSpec(
            grid=(grid_m,),
            in_specs=[
                pl.BlockSpec((bm, in_dim), lambda i: (i, 0)),        # x tile
                pl.BlockSpec((in_dim, hidden), lambda i: (0, 0)),    # W1 (resident)
                pl.BlockSpec((1, hidden), lambda i: (0, 0)),         # b1 (resident)
                pl.BlockSpec((hidden, n_classes), lambda i: (0, 0)),  # W2 (resident)
                pl.BlockSpec((1, n_classes), lambda i: (0, 0)),       # b2 (resident)
            ],
            out_specs=pl.BlockSpec((bm, n_classes), lambda i: (i, 0)),
        ),
        compiler_params=pltpu.CompilerParams(
            dimension_semantics=("parallel",),
        ),
    )(x_bf, w1_bf, b1_2d, w2_bf, b2_2d)

    return out_padded[:B]   # strip batch padding only; feature dims were never padded


def nominal_dense_net(x, w1, b1, w2, b2, *, block_m: int = 1024):
    """Forward pass of NominalDenseNet (eval mode).

    Args:
      x : (B, input_size) float32
      w1: (input_size, hidden) float32   (transposed vs. torch Linear.weight)
      b1: (hidden,) float32
      w2: (hidden, n_classes) float32
      b2: (n_classes,) float32
    Returns:
      (B, n_classes) float32 logits.
    """
    return _forward(x, w1, b1, w2, b2, block_m=block_m,
                    two_cores=_has_two_tensorcores())


def _reference_f32(x, w1, b1, w2, b2):
    h = x @ w1 + b1.reshape(1, -1)
    h = jnp.where(h >= 0.0, h, 0.01 * h)
    return h @ w2 + b2.reshape(1, -1)


def _reference_bf16(x, w1, b1, w2, b2):
    """Same numerics path as the kernel (bf16 MXU operands, f32 accumulation)."""
    h = jnp.dot(x.astype(jnp.bfloat16), w1.astype(jnp.bfloat16),
                preferred_element_type=jnp.float32) + b1.reshape(1, -1)
    h = jnp.where(h >= 0.0, h, 0.01 * h)
    return jnp.dot(h.astype(jnp.bfloat16), w2.astype(jnp.bfloat16),
                   preferred_element_type=jnp.float32) + b2.reshape(1, -1)


if __name__ == "__main__":
    # Shapes consistent with the module: input_size=32, hidden_size=64, n_classes=8,
    # dropout_rate=0.5 (inactive in eval mode).  Batch not a multiple of the tile so
    # the batch-padding path is exercised.
    B, IN, HID, NCLS = 200, 32, 64, 8

    key = jax.random.PRNGKey(0)
    kx, k1, kb1, k2, kb2 = jax.random.split(key, 5)

    x = jax.random.normal(kx, (B, IN), dtype=jnp.float32)
    bound1 = 1.0 / (IN ** 0.5)
    bound2 = 1.0 / (HID ** 0.5)
    w1 = jax.random.uniform(k1, (IN, HID), jnp.float32, -bound1, bound1)
    b1 = jax.random.uniform(kb1, (HID,), jnp.float32, -bound1, bound1)
    w2 = jax.random.uniform(k2, (HID, NCLS), jnp.float32, -bound2, bound2)
    b2 = jax.random.uniform(kb2, (NCLS,), jnp.float32, -bound2, bound2)

    out = jax.block_until_ready(nominal_dense_net(x, w1, b1, w2, b2))
    assert out.shape == (B, NCLS), out.shape

    # Tight check vs. a reference that uses the same bf16-operand / f32-accum path.
    ref_bf = _reference_bf16(x, w1, b1, w2, b2)
    assert jnp.allclose(out, ref_bf, atol=1e-3, rtol=1e-3), "mismatch vs bf16 reference"

    # Loose check vs. the full-f32 module semantics (bf16 operand rounding budget).
    ref_f32 = _reference_f32(x, w1, b1, w2, b2)
    assert jnp.allclose(out, ref_f32, atol=5e-2, rtol=5e-2), "mismatch vs f32 reference"

    print("KERNEL_OK")
</pallas_src>

<mosaic_0001>
module attributes {stable_mosaic.version = 11 : i64} {
  func.func @_mlp_kernel(%arg0: i32, %arg1: memref<200x32xbf16, #tpu.memory_space<vmem>>, %arg2: memref<32x64xbf16, #tpu.memory_space<vmem>>, %arg3: memref<1x64xf32, #tpu.memory_space<vmem>>, %arg4: memref<64x8xbf16, #tpu.memory_space<vmem>>, %arg5: memref<1x8xf32, #tpu.memory_space<vmem>>, %arg6: memref<200x8xf32, #tpu.memory_space<vmem>>) attributes {dimension_semantics = [#tpu.dimension_semantics<parallel>], iteration_bounds = array<i64: 1>, scalar_prefetch = 0 : i64, scratch_operands = 0 : i64, tpu.core_type = #tpu.core_type<tc>, window_params = [{transform_indices = @transform_0, window_bounds = array<i64: 200, 32>}, {pipeline_mode = #tpu.pipeline_mode<synchronous>, transform_indices = @transform_1, window_bounds = array<i64: 32, 64>}, {pipeline_mode = #tpu.pipeline_mode<synchronous>, transform_indices = @transform_2, window_bounds = array<i64: 1, 64>}, {pipeline_mode = #tpu.pipeline_mode<synchronous>, transform_indices = @transform_3, window_bounds = array<i64: 64, 8>}, {pipeline_mode = #tpu.pipeline_mode<synchronous>, transform_indices = @transform_4, window_bounds = array<i64: 1, 8>}, {transform_indices = @transform_5, window_bounds = array<i64: 200, 8>}]} {
    %c0 = arith.constant 0 : index
    %c0_0 = arith.constant 0 : index
    %0 = vector.load %arg1[%c0, %c0_0] : memref<200x32xbf16, #tpu.memory_space<vmem>>, vector<200x32xbf16>
    %c0_1 = arith.constant 0 : index
    %c0_2 = arith.constant 0 : index
    %1 = vector.load %arg2[%c0_1, %c0_2] : memref<32x64xbf16, #tpu.memory_space<vmem>>, vector<32x64xbf16>
    %cst = arith.constant dense<0.000000e+00> : vector<200x64xf32>
    %2 = tpu.matmul %0, %1, %cst {dimension_numbers = #tpu.dot_dimension_numbers<[1], [0], [0], [1], [0, 0, 1, 1], [], []>} : vector<200x32xbf16>, vector<32x64xbf16>, vector<200x64xf32> -> vector<200x64xf32>
    %c0_3 = arith.constant 0 : index
    %c0_4 = arith.constant 0 : index
    %3 = vector.load %arg3[%c0_3, %c0_4] : memref<1x64xf32, #tpu.memory_space<vmem>>, vector<1x64xf32>
    %4 = vector.broadcast %3 : vector<1x64xf32> to vector<200x64xf32>
    %5 = arith.addf %2, %4 : vector<200x64xf32>
    %cst_5 = arith.constant 0.000000e+00 : f32
    %6 = vector.broadcast %cst_5 : f32 to vector<200x64xf32>
    %7 = arith.cmpf oge, %5, %6 : vector<200x64xf32>
    %cst_6 = arith.constant 0.00999999977 : f32
    %8 = vector.broadcast %cst_6 : f32 to vector<200x64xf32>
    %9 = arith.mulf %8, %5 : vector<200x64xf32>
    %10 = arith.select %7, %5, %9 : vector<200x64xi1>, vector<200x64xf32>
    %11 = arith.truncf %10 : vector<200x64xf32> to vector<200x64xbf16>
    %c0_7 = arith.constant 0 : index
    %c0_8 = arith.constant 0 : index
    %12 = vector.load %arg4[%c0_7, %c0_8] : memref<64x8xbf16, #tpu.memory_space<vmem>>, vector<64x8xbf16>
    %cst_9 = arith.constant dense<0.000000e+00> : vector<200x8xf32>
    %13 = tpu.matmul %11, %12, %cst_9 {dimension_numbers = #tpu.dot_dimension_numbers<[1], [0], [0], [1], [0, 0, 1, 1], [], []>} : vector<200x64xbf16>, vector<64x8xbf16>, vector<200x8xf32> -> vector<200x8xf32>
    %c0_10 = arith.constant 0 : index
    %c0_11 = arith.constant 0 : index
    %14 = vector.load %arg5[%c0_10, %c0_11] : memref<1x8xf32, #tpu.memory_space<vmem>>, vector<1x8xf32>
    %15 = vector.broadcast %14 : vector<1x8xf32> to vector<200x8xf32>
    %16 = arith.addf %13, %15 : vector<200x8xf32>
    %c0_12 = arith.constant 0 : index
    %c0_13 = arith.constant 0 : index
    %17 = vector.load %arg6[%c0_12, %c0_13] : memref<200x8xf32, #tpu.memory_space<vmem>>, vector<200x8xf32>
    tpu.vector_store %arg6[%c0_12, %c0_13], %16 {strides = array<i32>} : memref<200x8xf32, #tpu.memory_space<vmem>>, vector<200x8xf32>,
    return
  }
  func.func @transform_0(%arg0: i32) -> (i32, i32) {
    %c0_i32 = arith.constant 0 : i32
    %c0_i32_0 = arith.constant 0 : i32
    return %arg0, %c0_i32 : i32, i32
  }
  func.func @transform_1(%arg0: i32) -> (i32, i32) {
    %c0_i32 = arith.constant 0 : i32
    %c0_i32_0 = arith.constant 0 : i32
    %c0_i32_1 = arith.constant 0 : i32
    return %c0_i32, %c0_i32_0 : i32, i32
  }
  func.func @transform_2(%arg0: i32) -> (i32, i32) {
    %c0_i32 = arith.constant 0 : i32
    %c0_i32_0 = arith.constant 0 : i32
    %c0_i32_1 = arith.constant 0 : i32
    return %c0_i32, %c0_i32_0 : i32, i32
  }
  func.func @transform_3(%arg0: i32) -> (i32, i32) {
    %c0_i32 = arith.constant 0 : i32
    %c0_i32_0 = arith.constant 0 : i32
    %c0_i32_1 = arith.constant 0 : i32
    return %c0_i32, %c0_i32_0 : i32, i32
  }
  func.func @transform_4(%arg0: i32) -> (i32, i32) {
    %c0_i32 = arith.constant 0 : i32
    %c0_i32_0 = arith.constant 0 : i32
    %c0_i32_1 = arith.constant 0 : i32
    return %c0_i32, %c0_i32_0 : i32, i32
  }
  func.func @transform_5(%arg0: i32) -> (i32, i32) {
    %c0_i32 = arith.constant 0 : i32
    %c0_i32_0 = arith.constant 0 : i32
    return %arg0, %c0_i32 : i32, i32
  }
}

</mosaic_0001>

<llo_original>
// kernel: _forward.1
$region0: #{_forward.1}
  #allocation0 [shape = 'u32[]', space=smem, size = 0x4, offset = 0x4, fixed_abs, tag = 'smem constant byte address 0x4 - core index']
  #allocation1 [shape = 'u32[72,128]{1,0:T(1,128)}', space=vmem, size = 0x9000, scoped, tag = 'internal scratch']
  %s0 = inlined_call_operand.vmem [shape: bf16[200,32], index: 0, kind: input, shape index: {}]
  %s1 = inlined_call_operand.vmem [shape: bf16[32,64], index: 1, kind: input, shape index: {}]
  %s2 = inlined_call_operand.vmem [shape: f32[1,64], index: 2, kind: input, shape index: {}]
  %s3 = inlined_call_operand.vmem [shape: bf16[64,8], index: 3, kind: input, shape index: {}]
  %s4 = inlined_call_operand.vmem [shape: f32[1,8], index: 4, kind: input, shape index: {}]
  %s5 = inlined_call_operand.vmem [shape: f32[200,8], index: 5, kind: output, shape index: {}]
  %s6 = sld [smem:[#allocation0]]
  $region30: #{_forward.1} parent=0
    _
  %s8 = ssub.s32 1, %s6
  %s9 = scalar_select 0, %s8, %s6
  // Predicated region
  $region2: #{_forward.1} parent=0 // pred_check
    _
  $region3: #{_forward.1} parent=0 // pred_check_branch
    %11 = sbr.rel (0) target = $region5
  $region4: #{_forward.1} parent=0 // pred_region
    _
  $region5: #{_forward.1} parent=0 // pred_fallthru
    _
  // Predicated region
  $region6: #{_forward.1} parent=0 // pred_check
    _
  $region7: #{_forward.1} parent=0 // pred_check_branch
    %13 = sbr.rel (0) target = $region9
  $region8: #{_forward.1} parent=0 // pred_region
    _
  $region9: #{_forward.1} parent=0 // pred_fallthru
    _
  // Predicated region
  $region10: #{_forward.1} parent=0 // pred_check
    _
  $region11: #{_forward.1} parent=0 // pred_check_branch
    %15 = sbr.rel (0) target = $region13
  $region12: #{_forward.1} parent=0 // pred_region
    _
  $region13: #{_forward.1} parent=0 // pred_fallthru
    _
  // Predicated region
  $region14: #{_forward.1} parent=0 // pred_check
    _
  $region15: #{_forward.1} parent=0 // pred_check_branch
    %17 = sbr.rel (0) target = $region17
  $region16: #{_forward.1} parent=0 // pred_region
    _
  $region17: #{_forward.1} parent=0 // pred_fallthru
    _
  // Predicated region
  $region18: #{_forward.1} parent=0 // pred_check
    _
  $region19: #{_forward.1} parent=0 // pred_check_branch
    %19 = sbr.rel (0) target = $region21
  $region20: #{_forward.1} parent=0 // pred_region
    _
  $region21: #{_forward.1} parent=0 // pred_fallthru
    _
  %v21 = vld [vmem:[%s0] sm:$0xf]
  %v22 = vld [vmem:[%s0 + $0x4] sm:$0xf]
  %v23 = vld [vmem:[%s0 + $0x8] sm:$0xf]
  %v24 = vld [vmem:[%s0 + $0xc] sm:$0xf]
  %v25 = vld [vmem:[%s0 + $0x10] sm:$0xf]
  %v26 = vld [vmem:[%s0 + $0x14] sm:$0xf]
  %v27 = vld [vmem:[%s0 + $0x18] sm:$0xf]
  %v28 = vld [vmem:[%s0 + $0x1c] sm:$0xf]
  %v29 = vld [vmem:[%s0 + $0x20] sm:$0xf]
  %v30 = vld [vmem:[%s0 + $0x24] sm:$0xf]
  %v31 = vld [vmem:[%s0 + $0x28] sm:$0xf]
  %v32 = vld [vmem:[%s0 + $0x2c] sm:$0xf]
  %v33 = vld [vmem:[%s0 + $0x30] sm:$0xf]
  %v34 = vld [vmem:[%s0 + $0x34] sm:$0xf]
  %v35 = vld [vmem:[%s0 + $0x38] sm:$0xf]
  %v36 = vld [vmem:[%s0 + $0x3c] sm:$0xf]
  %v37 = vld [vmem:[%s0 + $0x40] sm:$0xf]
  %v38 = vld [vmem:[%s0 + $0x44] sm:$0xf]
  %v39 = vld [vmem:[%s0 + $0x48] sm:$0xf]
  %v40 = vld [vmem:[%s0 + $0x4c] sm:$0xf]
  %v41 = vld [vmem:[%s0 + $0x50] sm:$0xf]
  %v42 = vld [vmem:[%s0 + $0x54] sm:$0xf]
  %v43 = vld [vmem:[%s0 + $0x58] sm:$0xf]
  %v44 = vld [vmem:[%s0 + $0x5c] sm:$0xf]
  %v45 = vld [vmem:[%s0 + $0x60] sm:$0xf]
  %v46 = vld [vmem:[%s1] sm:$0xf]
  %v47 = vld [vmem:[%s1 + $0x4] sm:$0xf]
  %v48 = vld [vmem:[%s1 + $0x8] sm:$0xf]
  %v49 = vld [vmem:[%s1 + $0xc] sm:$0xf]
  %v50 = vld [vmem:[%s2] sm:$0x1]
  %v52 = vperm.slane %v50, 0
  %v79 = vunpack.c.l.b16 %v21
  %v80 = vunpack.c.l.b16 %v22
  %v81 = vunpack.c.l.b16 %v23
  %v82 = vunpack.c.l.b16 %v24
  %v83 = vunpack.c.l.b16 %v25
  %v84 = vunpack.c.l.b16 %v26
  %v85 = vunpack.c.l.b16 %v27
  %v86 = vunpack.c.l.b16 %v28
  %v87 = vunpack.c.l.b16 %v29
  %v88 = vunpack.c.l.b16 %v30
  %v89 = vunpack.c.l.b16 %v31
  %v90 = vunpack.c.l.b16 %v32
  %v91 = vunpack.c.l.b16 %v33
  %v92 = vunpack.c.l.b16 %v34
  %v93 = vunpack.c.l.b16 %v35
  %v94 = vunpack.c.l.b16 %v36
  %v95 = vunpack.c.l.b16 %v37
  %v96 = vunpack.c.l.b16 %v38
  %v97 = vunpack.c.l.b16 %v39
  %v98 = vunpack.c.l.b16 %v40
  %v99 = vunpack.c.l.b16 %v41
  %v100 = vunpack.c.l.b16 %v42
  %v101 = vunpack.c.l.b16 %v43
  %v102 = vunpack.c.l.b16 %v44
  %v103 = vunpack.c.l.b16 %v45
  %v104 = vpack.c.b16 %v80, %v79
  %v105 = vpack.c.b16 %v82, %v81
  %v106 = vpack.c.b16 %v84, %v83
  %v107 = vpack.c.b16 %v86, %v85
  %v108 = vpack.c.b16 %v88, %v87
  %v109 = vpack.c.b16 %v90, %v89
  %v110 = vpack.c.b16 %v92, %v91
  %v111 = vpack.c.b16 %v94, %v93
  %v112 = vpack.c.b16 %v96, %v95
  %v113 = vpack.c.b16 %v98, %v97
  %v114 = vpack.c.b16 %v100, %v99
  %v115 = vpack.c.b16 %v102, %v101
  %v116 = vpack.c.b16 %v103, %v103
  %v121 = vunpack.c.l.b16 %v46
  %v122 = vunpack.c.l.b16 %v47
  %v123 = vunpack.c.l.b16 %v48
  %v124 = vunpack.c.l.b16 %v49
  %v125 = vpack.c.b16 %v122, %v121
  %v126 = vpack.c.b16 %v124, %v123
  %vm129 = vcmask 261120
  %v131 = vsel %vm129, %v104, 0
  %v134 = vsel %vm129, %v105, 0
  %v137 = vsel %vm129, %v106, 0
  %v140 = vsel %vm129, %v107, 0
  %v143 = vsel %vm129, %v108, 0
  %v146 = vsel %vm129, %v109, 0
  %v149 = vsel %vm129, %v110, 0
  %v152 = vsel %vm129, %v111, 0
  %v155 = vsel %vm129, %v112, 0
  %v158 = vsel %vm129, %v113, 0
  %v161 = vsel %vm129, %v114, 0
  %v164 = vsel %vm129, %v115, 0
  %v167 = vsel %vm129, %v116, 0
  %169 = vmatpush.bf16.msra.mxu0 0
  %170 = vmatpush.bf16.msra.mxu0 0
  %171 = vmatpush.bf16.msra.mxu0 0
  %172 = vmatpush.bf16.msra.mxu0 0
  %173 = vmatpush.bf16.msra.mxu0 0
  %174 = vmatpush.bf16.msra.mxu0 0
  %175 = vmatpush.bf16.msra.mxu0 %v126
  %176 = vmatpush.bf16.msra.mxu0 %v125
  %177 = vmatmul.bf16.gmra.mxu0 %v131
  %v178 = vpop.f32.mrf.mxu0
  %v179 = vadd.f32 %v52, %v178
  %v180 = vpop.f32.mrf.mxu0
  %v181 = vadd.f32 %v52, %v180
  %182 = vmatmul.bf16.gmra.mxu0 %v134
  %v183 = vpop.f32.mrf.mxu0
  %v184 = vadd.f32 %v52, %v183
  %v185 = vpop.f32.mrf.mxu0
  %v186 = vadd.f32 %v52, %v185
  %187 = vmatmul.bf16.gmra.mxu0 %v137
  %v188 = vpop.f32.mrf.mxu0
  %v189 = vadd.f32 %v52, %v188
  %v190 = vpop.f32.mrf.mxu0
  %v191 = vadd.f32 %v52, %v190
  %192 = vmatmul.bf16.gmra.mxu0 %v140
  %v193 = vpop.f32.mrf.mxu0
  %v194 = vadd.f32 %v52, %v193
  %v195 = vpop.f32.mrf.mxu0
  %v196 = vadd.f32 %v52, %v195
  %197 = vmatmul.bf16.gmra.mxu0 %v143
  %v198 = vpop.f32.mrf.mxu0
  %v199 = vadd.f32 %v52, %v198
  %v200 = vpop.f32.mrf.mxu0
  %v201 = vadd.f32 %v52, %v200
  %202 = vmatmul.bf16.gmra.mxu0 %v146
  %v203 = vpop.f32.mrf.mxu0
  %v204 = vadd.f32 %v52, %v203
  %v205 = vpop.f32.mrf.mxu0
  %v206 = vadd.f32 %v52, %v205
  %207 = vmatmul.bf16.gmra.mxu0 %v149
  %v208 = vpop.f32.mrf.mxu0
  %v209 = vadd.f32 %v52, %v208
  %v210 = vpop.f32.mrf.mxu0
  %v211 = vadd.f32 %v52, %v210
  %212 = vmatmul.bf16.gmra.mxu0 %v152
  %v213 = vpop.f32.mrf.mxu0
  %v214 = vadd.f32 %v52, %v213
  %v215 = vpop.f32.mrf.mxu0
  %v216 = vadd.f32 %v52, %v215
  %217 = vmatmul.bf16.gmra.mxu0 %v155
  %v218 = vpop.f32.mrf.mxu0
  %v219 = vadd.f32 %v52, %v218
  %v220 = vpop.f32.mrf.mxu0
  %v221 = vadd.f32 %v52, %v220
  %222 = vmatmul.bf16.gmra.mxu0 %v158
  %v223 = vpop.f32.mrf.mxu0
  %v224 = vadd.f32 %v52, %v223
  %v225 = vpop.f32.mrf.mxu0
  %v226 = vadd.f32 %v52, %v225
  %227 = vmatmul.bf16.gmra.mxu0 %v161
  %v228 = vpop.f32.mrf.mxu0
  %v229 = vadd.f32 %v52, %v228
  %v230 = vpop.f32.mrf.mxu0
  %v231 = vadd.f32 %v52, %v230
  %232 = vmatmul.bf16.gmra.mxu0 %v164
  %v233 = vpop.f32.mrf.mxu0
  %v234 = vadd.f32 %v52, %v233
  %v235 = vpop.f32.mrf.mxu0
  %v236 = vadd.f32 %v52, %v235
  %237 = vmatmul.bf16.gmra.mxu0 %v167
  %v238 = vpop.f32.mrf.mxu0
  %v239 = vadd.f32 %v52, %v238
  %v240 = vpop.f32.mrf.mxu0
  %241 = vdwg.mxu0
  %vm242 = vcmp.ge.f32.partialorder %v179, 0.0
  %vm243 = vcmp.ge.f32.partialorder %v181, 0.0
  %vm244 = vcmp.ge.f32.partialorder %v184, 0.0
  %vm245 = vcmp.ge.f32.partialorder %v186, 0.0
  %vm246 = vcmp.ge.f32.partialorder %v189, 0.0
  %vm247 = vcmp.ge.f32.partialorder %v191, 0.0
  %vm248 = vcmp.ge.f32.partialorder %v194, 0.0
  %vm249 = vcmp.ge.f32.partialorder %v196, 0.0
  %vm250 = vcmp.ge.f32.partialorder %v199, 0.0
  %vm251 = vcmp.ge.f32.partialorder %v201, 0.0
  %vm252 = vcmp.ge.f32.partialorder %v204, 0.0
  %vm253 = vcmp.ge.f32.partialorder %v206, 0.0
  %vm254 = vcmp.ge.f32.partialorder %v209, 0.0
  %vm255 = vcmp.ge.f32.partialorder %v211, 0.0
  %vm256 = vcmp.ge.f32.partialorder %v214, 0.0
  %vm257 = vcmp.ge.f32.partialorder %v216, 0.0
  %vm258 = vcmp.ge.f32.partialorder %v219, 0.0
  %vm259 = vcmp.ge.f32.partialorder %v221, 0.0
  %vm260 = vcmp.ge.f32.partialorder %v224, 0.0
  %vm261 = vcmp.ge.f32.partialorder %v226, 0.0
  %vm262 = vcmp.ge.f32.partialorder %v229, 0.0
  %vm263 = vcmp.ge.f32.partialorder %v231, 0.0
  %vm264 = vcmp.ge.f32.partialorder %v234, 0.0
  %vm265 = vcmp.ge.f32.partialorder %v236, 0.0
  %vm266 = vcmp.ge.f32.partialorder %v239, 0.0
  %v267 = vmul.f32 %v179, 0.01
  %v268 = vmul.f32 %v181, 0.01
  %v269 = vmul.f32 %v184, 0.01
  %v270 = vmul.f32 %v186, 0.01
  %v271 = vmul.f32 %v189, 0.01
  %v272 = vmul.f32 %v191, 0.01
  %v273 = vmul.f32 %v194, 0.01
  %v274 = vmul.f32 %v196, 0.01
  %v275 = vmul.f32 %v199, 0.01
  %v276 = vmul.f32 %v201, 0.01
  %v277 = vmul.f32 %v204, 0.01
  %v278 = vmul.f32 %v206, 0.01
  %v279 = vmul.f32 %v209, 0.01
  %v280 = vmul.f32 %v211, 0.01
  %v281 = vmul.f32 %v214, 0.01
  %v282 = vmul.f32 %v216, 0.01
  %v283 = vmul.f32 %v219, 0.01
  %v284 = vmul.f32 %v221, 0.01
  %v285 = vmul.f32 %v224, 0.01
  %v286 = vmul.f32 %v226, 0.01
  %v287 = vmul.f32 %v229, 0.01
  %v288 = vmul.f32 %v231, 0.01
  %v289 = vmul.f32 %v234, 0.01
  %v290 = vmul.f32 %v236, 0.01
  %v291 = vmul.f32 %v239, 0.01
  %v292 = vsel %vm242, %v179, %v267
  %v293 = vsel %vm243, %v181, %v268
  %v294 = vsel %vm244, %v184, %v269
  %v295 = vsel %vm245, %v186, %v270
  %v296 = vsel %vm246, %v189, %v271
  %v297 = vsel %vm247, %v191, %v272
  %v298 = vsel %vm248, %v194, %v273
  %v299 = vsel %vm249, %v196, %v274
  %v300 = vsel %vm250, %v199, %v275
  %v301 = vsel %vm251, %v201, %v276
  %v302 = vsel %vm252, %v204, %v277
  %v303 = vsel %vm253, %v206, %v278
  %v304 = vsel %vm254, %v209, %v279
  %v305 = vsel %vm255, %v211, %v280
  %v306 = vsel %vm256, %v214, %v281
  %v307 = vsel %vm257, %v216, %v282
  %v308 = vsel %vm258, %v219, %v283
  %v309 = vsel %vm259, %v221, %v284
  %v310 = vsel %vm260, %v224, %v285
  %v311 = vsel %vm261, %v226, %v286
  %v312 = vsel %vm262, %v229, %v287
  %v313 = vsel %vm263, %v231, %v288
  %v314 = vsel %vm264, %v234, %v289
  %v315 = vsel %vm265, %v236, %v290
  %v316 = vsel %vm266, %v239, %v291
  %v317 = vpack.c.bf16 %v293, %v292
  %v318 = vpack.c.bf16 %v295, %v294
  %v319 = vpack.c.bf16 %v297, %v296
  %v320 = vpack.c.bf16 %v299, %v298
  %v321 = vpack.c.bf16 %v301, %v300
  %v322 = vpack.c.bf16 %v303, %v302
  %v323 = vpack.c.bf16 %v305, %v304
  %v324 = vpack.c.bf16 %v307, %v306
  %v325 = vpack.c.bf16 %v309, %v308
  %v326 = vpack.c.bf16 %v311, %v310
  %v327 = vpack.c.bf16 %v313, %v312
  %v328 = vpack.c.bf16 %v315, %v314
  %v329 = vpack.c.bf16 %v316, %v316
  %v330 = vld [vmem:[%s3] sm:$0xf]
  %v331 = vld [vmem:[%s3 + $0x4] sm:$0xf]
  %v332 = vld [vmem:[%s3 + $0x8] sm:$0xf]
  %v333 = vld [vmem:[%s3 + $0xc] sm:$0xf]
  %v334 = vld [vmem:[%s3 + $0x10] sm:$0xf]
  %v335 = vld [vmem:[%s3 + $0x14] sm:$0xf]
  %v336 = vld [vmem:[%s3 + $0x18] sm:$0xf]
  %v337 = vld [vmem:[%s3 + $0x1c] sm:$0xf]
  %v338 = vld [vmem:[%s4] sm:$0x1]
  %v340 = vperm.slane %v338, 0
  %v350 = vunpack.c.l.b16 %v330
  %v351 = vunpack.c.l.b16 %v331
  %v352 = vunpack.c.l.b16 %v332
  %v353 = vunpack.c.l.b16 %v333
  %v354 = vunpack.c.l.b16 %v334
  %v355 = vunpack.c.l.b16 %v335
  %v356 = vunpack.c.l.b16 %v336
  %v357 = vunpack.c.l.b16 %v337
  %v358 = vpack.c.b16 %v351, %v350
  %v359 = vpack.c.b16 %v353, %v352
  %v360 = vpack.c.b16 %v355, %v354
  %v361 = vpack.c.b16 %v357, %v356
  %vm366 = vcmask 523264
  %v368 = vsel %vm366, %v317, 0
  %v371 = vsel %vm366, %v318, 0
  %v374 = vsel %vm366, %v319, 0
  %v377 = vsel %vm366, %v320, 0
  %v380 = vsel %vm366, %v321, 0
  %v383 = vsel %vm366, %v322, 0
  %v386 = vsel %vm366, %v323, 0
  %v389 = vsel %vm366, %v324, 0
  %v392 = vsel %vm366, %v325, 0
  %v395 = vsel %vm366, %v326, 0
  %v398 = vsel %vm366, %v327, 0
  %v401 = vsel %vm366, %v328, 0
  %v404 = vsel %vm366, %v329, 0
  %406 = vmatpush.bf16.msra.mxu0 0
  %407 = vmatpush.bf16.msra.mxu0 0
  %408 = vmatpush.bf16.msra.mxu0 0
  %409 = vmatpush.bf16.msra.mxu0 0
  %410 = vmatpush.bf16.msra.mxu0 %v361
  %411 = vmatpush.bf16.msra.mxu0 %v360
  %412 = vmatpush.bf16.msra.mxu0 %v359
  %413 = vmatpush.bf16.msra.mxu0 %v358
  %414 = vmatmul.bf16.gmra.mxu0 %v368
  %v415 = vpop.f32.mrf.mxu0
  %v416 = vadd.f32 %v340, %v415
  %v417 = vpop.f32.mrf.mxu0
  %v418 = vadd.f32 %v340, %v417
  %419 = vmatmul.bf16.gmra.mxu0 %v371
  %v420 = vpop.f32.mrf.mxu0
  %v421 = vadd.f32 %v340, %v420
  %v422 = vpop.f32.mrf.mxu0
  %v423 = vadd.f32 %v340, %v422
  %424 = vmatmul.bf16.gmra.mxu0 %v374
  %v425 = vpop.f32.mrf.mxu0
  %v426 = vadd.f32 %v340, %v425
  %v427 = vpop.f32.mrf.mxu0
  %v428 = vadd.f32 %v340, %v427
  %429 = vmatmul.bf16.gmra.mxu0 %v377
  %v430 = vpop.f32.mrf.mxu0
  %v431 = vadd.f32 %v340, %v430
  %v432 = vpop.f32.mrf.mxu0
  %v433 = vadd.f32 %v340, %v432
  %434 = vmatmul.bf16.gmra.mxu0 %v380
  %v435 = vpop.f32.mrf.mxu0
  %v436 = vadd.f32 %v340, %v435
  %v437 = vpop.f32.mrf.mxu0
  %v438 = vadd.f32 %v340, %v437
  %439 = vmatmul.bf16.gmra.mxu0 %v383
  %v440 = vpop.f32.mrf.mxu0
  %v441 = vadd.f32 %v340, %v440
  %v442 = vpop.f32.mrf.mxu0
  %v443 = vadd.f32 %v340, %v442
  %444 = vmatmul.bf16.gmra.mxu0 %v386
  %v445 = vpop.f32.mrf.mxu0
  %v446 = vadd.f32 %v340, %v445
  %v447 = vpop.f32.mrf.mxu0
  %v448 = vadd.f32 %v340, %v447
  %449 = vmatmul.bf16.gmra.mxu0 %v389
  %v450 = vpop.f32.mrf.mxu0
  %v451 = vadd.f32 %v340, %v450
  %v452 = vpop.f32.mrf.mxu0
  %v453 = vadd.f32 %v340, %v452
  %454 = vmatmul.bf16.gmra.mxu0 %v392
  %v455 = vpop.f32.mrf.mxu0
  %v456 = vadd.f32 %v340, %v455
  %v457 = vpop.f32.mrf.mxu0
  %v458 = vadd.f32 %v340, %v457
  %459 = vmatmul.bf16.gmra.mxu0 %v395
  %v460 = vpop.f32.mrf.mxu0
  %v461 = vadd.f32 %v340, %v460
  %v462 = vpop.f32.mrf.mxu0
  %v463 = vadd.f32 %v340, %v462
  %464 = vmatmul.bf16.gmra.mxu0 %v398
  %v465 = vpop.f32.mrf.mxu0
  %v466 = vadd.f32 %v340, %v465
  %v467 = vpop.f32.mrf.mxu0
  %v468 = vadd.f32 %v340, %v467
  %469 = vmatmul.bf16.gmra.mxu0 %v401
  %v470 = vpop.f32.mrf.mxu0
  %v471 = vadd.f32 %v340, %v470
  %v472 = vpop.f32.mrf.mxu0
  %v473 = vadd.f32 %v340, %v472
  %474 = vmatmul.bf16.gmra.mxu0 %v404
  %v475 = vpop.f32.mrf.mxu0
  %v476 = vadd.f32 %v340, %v475
  %v477 = vpop.f32.mrf.mxu0
  %478 = vdwg.mxu0
  %vm479 = vcmask 64512
  %480 = vst.msk [vmem:[%s5] sm:$0xff] %vm479, %v416
  %481 = vst.msk [vmem:[%s5 + $0x8] sm:$0xff] %vm479, %v418
  %482 = vst.msk [vmem:[%s5 + $0x10] sm:$0xff] %vm479, %v421
  %483 = vst.msk [vmem:[%s5 + $0x18] sm:$0xff] %vm479, %v423
  %484 = vst.msk [vmem:[%s5 + $0x20] sm:$0xff] %vm479, %v426
  %485 = vst.msk [vmem:[%s5 + $0x28] sm:$0xff] %vm479, %v428
  %486 = vst.msk [vmem:[%s5 + $0x30] sm:$0xff] %vm479, %v431
  %487 = vst.msk [vmem:[%s5 + $0x38] sm:$0xff] %vm479, %v433
  %488 = vst.msk [vmem:[%s5 + $0x40] sm:$0xff] %vm479, %v436
  %489 = vst.msk [vmem:[%s5 + $0x48] sm:$0xff] %vm479, %v438
  %490 = vst.msk [vmem:[%s5 + $0x50] sm:$0xff] %vm479, %v441
  %491 = vst.msk [vmem:[%s5 + $0x58] sm:$0xff] %vm479, %v443
  %492 = vst.msk [vmem:[%s5 + $0x60] sm:$0xff] %vm479, %v446
  %493 = vst.msk [vmem:[%s5 + $0x68] sm:$0xff] %vm479, %v448
  %494 = vst.msk [vmem:[%s5 + $0x70] sm:$0xff] %vm479, %v451
  %495 = vst.msk [vmem:[%s5 + $0x78] sm:$0xff] %vm479, %v453
  %496 = vst.msk [vmem:[%s5 + $0x80] sm:$0xff] %vm479, %v456
  %497 = vst.msk [vmem:[%s5 + $0x88] sm:$0xff] %vm479, %v458
  %498 = vst.msk [vmem:[%s5 + $0x90] sm:$0xff] %vm479, %v461
  %499 = vst.msk [vmem:[%s5 + $0x98] sm:$0xff] %vm479, %v463
  %500 = vst.msk [vmem:[%s5 + $0xa0] sm:$0xff] %vm479, %v466
  %501 = vst.msk [vmem:[%s5 + $0xa8] sm:$0xff] %vm479, %v468
  %502 = vst.msk [vmem:[%s5 + $0xb0] sm:$0xff] %vm479, %v471
  %503 = vst.msk [vmem:[%s5 + $0xb8] sm:$0xff] %vm479, %v473
  %504 = vst.msk [vmem:[%s5 + $0xc0] sm:$0xff] %vm479, %v476
  // Predicated region
  $region22: #{_forward.1} parent=0 // pred_check
    _
  $region23: #{_forward.1} parent=0 // pred_check_branch
    %506 = sbr.rel (0) target = $region25
  $region24: #{_forward.1} parent=0 // pred_region
    _
  $region25: #{_forward.1} parent=0 // pred_fallthru
    _
  // Predicated region
  $region26: #{_forward.1} parent=0 // pred_check
    _
  $region27: #{_forward.1} parent=0 // pred_check_branch
    %508 = sbr.rel (0) target = $region29
  $region28: #{_forward.1} parent=0 // pred_region
    _
  $region29: #{_forward.1} parent=0 // pred_fallthru
    _

</llo_original>
